<compile_context>
chip_gen: v6e
topology: v6e:2x2x1
jax: 0.10.0
libtpu: 0.0.40
codegen_flags: <defaults>
</compile_context>

<pallas_src>
import functools

import jax
import jax.numpy as jnp
from jax.experimental import pallas as pl
from jax.experimental.pallas import tpu as pltpu


def _round_up(x: int, m: int) -> int:
    return ((x + m - 1) // m) * m


def _round_down(x: int, m: int) -> int:
    return (x // m) * m


def _cdiv(a: int, b: int) -> int:
    return -(-a // b)


def _dividing_chunk(n_hidden_p: int, target: int) -> int:
    """Largest multiple of 128 that divides n_hidden_p and is <= target."""
    m = n_hidden_p // 128
    best = 128
    for d in range(1, m + 1):
        if m % d == 0 and 128 * d <= target:
            best = 128 * d
    return best


# ----------------------------------------------------------------------------
# Kernel: grid = (batch_tiles, hidden_chunks).  Hidden axis is a reduction —
# output block & f32 accumulator are revisited across it (init / finalize via
# pl.when).  With a single hidden chunk this degenerates to one fused pass.
# ----------------------------------------------------------------------------
def svmnet_kernel(x_ref, w1_ref, b1_ref, w2_ref, b2_ref, o_ref, acc_ref):
    k = pl.program_id(1)

    @pl.when(k == 0)
    def _init():
        acc_ref[...] = jnp.zeros_like(acc_ref)

    # Cast x to the weight (MXU operand) dtype in-kernel — no pre-cast HBM copy.
    h = jnp.dot(x_ref[...].astype(w1_ref.dtype), w1_ref[...],
                preferred_element_type=jnp.float32)
    h = jnp.maximum(h + b1_ref[...], 0.0)                 # bias + ReLU in f32
    acc_ref[...] += jnp.dot(h.astype(w2_ref.dtype), w2_ref[...],
                            preferred_element_type=jnp.float32)

    @pl.when(k == pl.num_programs(1) - 1)
    def _finalize():
        o_ref[...] = (acc_ref[...] + b2_ref[...]).astype(o_ref.dtype)


# ----------------------------------------------------------------------------
# One-time parameter preparation (hoisted out of the per-call forward path):
# pad hidden/out feature dims to multiples of 128 and cast weights to the MXU
# compute dtype.  Biases stay f32 (elementwise math is f32 on all generations).
# ----------------------------------------------------------------------------
def prepare_params(w1, b1, w2, b2, *, compute_dtype=jnp.bfloat16):
    n_input, n_hidden = w1.shape
    n_out = w2.shape[1]
    n_hidden_p = _round_up(n_hidden, 128)
    n_out_p = _round_up(n_out, 128)

    w1_p = jnp.zeros((n_input, n_hidden_p), compute_dtype).at[:, :n_hidden].set(
        w1.astype(compute_dtype))
    w2_p = jnp.zeros((n_hidden_p, n_out_p), compute_dtype).at[:n_hidden, :n_out].set(
        w2.astype(compute_dtype))
    b1_p = jnp.zeros((1, n_hidden_p), jnp.float32).at[0, :n_hidden].set(
        b1.astype(jnp.float32))
    b2_p = jnp.zeros((1, n_out_p), jnp.float32).at[0, :n_out].set(
        b2.astype(jnp.float32))
    return w1_p, b1_p, w2_p, b2_p, int(n_out)


@functools.partial(jax.jit, static_argnames=("n_out", "tb", "hk", "vmem_limit"))
def _svmnet_pallas(x, w1_p, b1_p, w2_p, b2_p, *, n_out, tb, hk, vmem_limit):
    batch, n_input = x.shape
    n_hidden_p = w1_p.shape[1]
    n_out_p = w2_p.shape[1]
    nk = n_hidden_p // hk
    num_tiles = _cdiv(batch, tb)

    if nk == 1:
        # Weights fit the VMEM budget: keep them resident with a SINGLE copy
        # (memory-space placement, no pipelining => no double-buffering).
        w1_spec = pl.BlockSpec(memory_space=pltpu.MemorySpace.VMEM)
        b1_spec = pl.BlockSpec(memory_space=pltpu.MemorySpace.VMEM)
        w2_spec = pl.BlockSpec(memory_space=pltpu.MemorySpace.VMEM)
    else:
        # Large hidden dim: stream weight chunks along the reduction axis
        # (these indices change with k, so default double-buffering is wanted).
        w1_spec = pl.BlockSpec((n_input, hk), lambda i, k: (0, k))
        b1_spec = pl.BlockSpec((1, hk), lambda i, k: (0, k))
        w2_spec = pl.BlockSpec((hk, n_out_p), lambda i, k: (k, 0))
    b2_spec = pl.BlockSpec(memory_space=pltpu.MemorySpace.VMEM)  # tiny, resident

    x_item = jnp.dtype(x.dtype).itemsize
    w_item = jnp.dtype(w1_p.dtype).itemsize
    flops = 2 * batch * (n_input * n_hidden_p + n_hidden_p * n_out_p)
    bytes_accessed = (batch * n_input * x_item
                      + (n_input * n_hidden_p + n_hidden_p * n_out_p) * w_item
                      + (n_hidden_p + n_out_p) * 4
                      + batch * n_out_p * x_item)
    cost = pl.CostEstimate(flops=flops, transcendentals=0,
                           bytes_accessed=bytes_accessed)

    out_p = pl.pallas_call(
        svmnet_kernel,
        out_shape=jax.ShapeDtypeStruct((batch, n_out_p), x.dtype),
        grid=(num_tiles, nk),
        in_specs=[
            pl.BlockSpec((tb, n_input), lambda i, k: (i, 0)),   # x batch tile
            w1_spec, b1_spec, w2_spec, b2_spec,
        ],
        out_specs=pl.BlockSpec((tb, n_out_p), lambda i, k: (i, 0)),
        scratch_shapes=[pltpu.VMEM((tb, n_out_p), jnp.float32)],  # f32 accumulator
        compiler_params=pltpu.CompilerParams(
            dimension_semantics=("parallel", "arbitrary"),
            vmem_limit_bytes=int(vmem_limit),
        ),
        cost_estimate=cost,
    )(x, w1_p, b1_p, w2_p, b2_p)

    # Slice off output-feature padding (no batch padding was added).
    return out_p[:, :n_out]


def svmnet_forward(x, params, *, block_batch=None, hidden_chunk=None):
    """Forward pass: relu(x @ W1 + b1) @ W2 + b2 using the fused Pallas kernel."""
    w1_p, b1_p, w2_p, b2_p, n_out = params
    batch, n_input = x.shape
    n_hidden_p = w1_p.shape[1]
    n_out_p = w2_p.shape[1]

    x_item = jnp.dtype(x.dtype).itemsize
    w_item = jnp.dtype(w1_p.dtype).itemsize
    out_item = x_item

    # ---- generation-aware VMEM budget (128 MiB v5e/v6e, 64 MiB per-core v7x).
    try:
        vmem_cap = int(pltpu.get_tpu_info().vmem_capacity_bytes)
    except Exception:
        vmem_cap = 64 << 20          # conservative fallback (v7x per-core)
    if vmem_cap <= 0:
        vmem_cap = 64 << 20
    vmem_budget = int(vmem_cap * 0.85)

    # ---- hidden chunk size: resident single-buffered weights if they fit,
    #      otherwise the largest 128-multiple divisor of n_hidden_p whose
    #      (double-buffered) chunk footprint leaves room for the batch tiles.
    def weight_bytes(h, nbuf):
        return nbuf * ((n_input * h + h * n_out_p) * w_item + h * 4) + n_out_p * 4

    if hidden_chunk is not None:
        target = max(128, _round_up(int(hidden_chunk), 128))
    else:
        target = n_hidden_p
        while target > 128 and weight_bytes(target, 1) > vmem_budget // 2:
            target //= 2
    hk = _dividing_chunk(n_hidden_p, target)
    nk = n_hidden_p // hk
    fixed = weight_bytes(hk, 1 if nk == 1 else 2)

    # ---- batch tile from the remaining VMEM budget:
    #      2x buffered x/out tiles + f32 hidden temp + f32 accumulator per row.
    per_row = (2 * n_input * x_item + 2 * n_out_p * out_item
               + hk * 4 + n_out_p * 4)
    tb = max((vmem_budget - fixed) // per_row, 8)
    tb = min(tb, 1024)                       # per-step overhead amortized well before this
    if block_batch is not None:
        tb = min(tb, max(int(block_batch), 1))
    if batch < 8:
        tb = batch                           # full-extent block (legal for tiny batches)
    else:
        tb = max(8, _round_down(min(tb, batch), 8))
        # Guarantee >= 2 batch tiles (megacore sharding + DMA/MXU overlap).
        if batch >= 16 and _cdiv(batch, tb) == 1:
            tb = _round_up(_cdiv(batch, 2), 8)

    vmem_need = fixed + tb * per_row
    vmem_limit = min(max(vmem_need + (4 << 20), 32 << 20), int(vmem_cap * 0.95))

    return _svmnet_pallas(x, w1_p, b1_p, w2_p, b2_p,
                          n_out=int(n_out), tb=int(tb), hk=int(hk),
                          vmem_limit=int(vmem_limit))


def init_params(key, n_input, n_hidden, n_out, dtype=jnp.float32):
    # Mimics torch.nn.Linear's uniform(-1/sqrt(fan_in), 1/sqrt(fan_in)) init.
    k1, k2, k3, k4 = jax.random.split(key, 4)
    bound1 = 1.0 / (n_input ** 0.5)
    bound2 = 1.0 / (n_hidden ** 0.5)
    # Stored already-transposed relative to PyTorch's (out, in) layout.
    w1 = jax.random.uniform(k1, (n_input, n_hidden), dtype, -bound1, bound1)
    b1 = jax.random.uniform(k2, (n_hidden,), dtype, -bound1, bound1)
    w2 = jax.random.uniform(k3, (n_hidden, n_out), dtype, -bound2, bound2)
    b2 = jax.random.uniform(k4, (n_out,), dtype, -bound2, bound2)
    return w1, b1, w2, b2


def reference_forward(x, w1, b1, w2, b2):
    h = jnp.maximum(x @ w1 + b1, 0.0)
    return h @ w2 + b2


if __name__ == "__main__":
    key = jax.random.PRNGKey(0)
    kx, kp = jax.random.split(key)

    # Small shapes; batch deliberately not a multiple of the tile so the
    # partial-last-tile path is exercised.
    batch, n_input, n_hidden, n_out = 200, 32, 64, 8
    x = jax.random.normal(kx, (batch, n_input), jnp.float32)
    w1, b1, w2, b2 = init_params(kp, n_input, n_hidden, n_out)
    ref = reference_forward(x, w1, b1, w2, b2)

    # f32 MXU path, explicit small tile -> multi-tile grid with a partial tile.
    params_f32 = prepare_params(w1, b1, w2, b2, compute_dtype=jnp.float32)
    out_f32 = jax.block_until_ready(svmnet_forward(x, params_f32, block_batch=64))
    assert out_f32.shape == (batch, n_out)
    assert jnp.allclose(out_f32, ref, atol=1e-5, rtol=1e-5), \
        "f32 kernel mismatch vs pure-JAX reference"

    # bf16 MXU operands (f32 accumulation), auto VMEM-budget tile; the wrapper
    # forces >= 2 batch tiles so both v7x TensorCores are used.
    params_bf16 = prepare_params(w1, b1, w2, b2, compute_dtype=jnp.bfloat16)
    out_bf16 = jax.block_until_ready(svmnet_forward(x, params_bf16))
    assert out_bf16.shape == (batch, n_out)
    assert jnp.allclose(out_bf16, ref, atol=5e-2, rtol=5e-2), \
        "bf16 kernel mismatch vs pure-JAX reference"

    # Chunked-hidden (reduction grid axis) path, forced for coverage of the
    # large-model regime where weights don't stay fully resident (v7x 64 MiB).
    n_hidden2 = 200
    w1c, b1c, w2c, b2c = init_params(kp, n_input, n_hidden2, n_out)
    refc = reference_forward(x, w1c, b1c, w2c, b2c)
    params_c = prepare_params(w1c, b1c, w2c, b2c, compute_dtype=jnp.float32)
    out_c = jax.block_until_ready(
        svmnet_forward(x, params_c, block_batch=64, hidden_chunk=128))
    assert out_c.shape == (batch, n_out)
    assert jnp.allclose(out_c, refc, atol=1e-4, rtol=1e-4), \
        "chunked-hidden kernel mismatch vs pure-JAX reference"

    print("KERNEL_OK")
</pallas_src>

<mosaic_0001>
module attributes {stable_mosaic.version = 11 : i64} {
  func.func @svmnet_kernel(%arg0: i32, %arg1: i32, %arg2: memref<64x32xf32, #tpu.memory_space<vmem>>, %arg3: memref<32x128xf32, #tpu.memory_space<vmem>>, %arg4: memref<1x128xf32, #tpu.memory_space<vmem>>, %arg5: memref<128x128xf32, #tpu.memory_space<vmem>>, %arg6: memref<1x128xf32, #tpu.memory_space<vmem>>, %arg7: memref<64x128xf32, #tpu.memory_space<vmem>>, %arg8: memref<64x128xf32, #tpu.memory_space<vmem>>) attributes {dimension_semantics = [#tpu.dimension_semantics<parallel>, #tpu.dimension_semantics<arbitrary>], iteration_bounds = array<i64: 4, 1>, scalar_prefetch = 0 : i64, scratch_operands = 1 : i64, tpu.core_type = #tpu.core_type<tc>, window_params = [{transform_indices = @transform_0, window_bounds = array<i64: 64, 32>}, {pipeline_mode = #tpu.pipeline_mode<synchronous>, transform_indices = @transform_1, window_bounds = array<i64: 32, 128>}, {pipeline_mode = #tpu.pipeline_mode<synchronous>, transform_indices = @transform_2, window_bounds = array<i64: 1, 128>}, {pipeline_mode = #tpu.pipeline_mode<synchronous>, transform_indices = @transform_3, window_bounds = array<i64: 128, 128>}, {pipeline_mode = #tpu.pipeline_mode<synchronous>, transform_indices = @transform_4, window_bounds = array<i64: 1, 128>}, {transform_indices = @transform_5, window_bounds = array<i64: 64, 128>}]} {
    %c0_i32 = arith.constant 0 : i32
    %0 = arith.cmpi eq, %arg1, %c0_i32 : i32
    %1 = arith.extui %0 : i1 to i32
    %c0_i32_0 = arith.constant 0 : i32
    %2 = arith.cmpi ne, %1, %c0_i32_0 : i32
    scf.if %2 {
      %cst_16 = arith.constant 0.000000e+00 : f32
      %19 = vector.broadcast %cst_16 : f32 to vector<64x128xf32>
      %c0_17 = arith.constant 0 : index
      %c0_18 = arith.constant 0 : index
      %20 = vector.load %arg8[%c0_17, %c0_18] : memref<64x128xf32, #tpu.memory_space<vmem>>, vector<64x128xf32>
      tpu.vector_store %arg8[%c0_17, %c0_18], %19 {strides = array<i32>} : memref<64x128xf32, #tpu.memory_space<vmem>>, vector<64x128xf32>,
    } else {
    }
    %c0 = arith.constant 0 : index
    %c0_1 = arith.constant 0 : index
    %3 = vector.load %arg2[%c0, %c0_1] : memref<64x32xf32, #tpu.memory_space<vmem>>, vector<64x32xf32>
    %c0_2 = arith.constant 0 : index
    %c0_3 = arith.constant 0 : index
    %4 = vector.load %arg3[%c0_2, %c0_3] : memref<32x128xf32, #tpu.memory_space<vmem>>, vector<32x128xf32>
    %cst = arith.constant dense<0.000000e+00> : vector<64x128xf32>
    %5 = tpu.matmul %3, %4, %cst {dimension_numbers = #tpu.dot_dimension_numbers<[1], [0], [0], [1], [0, 0, 1, 1], [], []>} : vector<64x32xf32>, vector<32x128xf32>, vector<64x128xf32> -> vector<64x128xf32>
    %c0_4 = arith.constant 0 : index
    %c0_5 = arith.constant 0 : index
    %6 = vector.load %arg4[%c0_4, %c0_5] : memref<1x128xf32, #tpu.memory_space<vmem>>, vector<1x128xf32>
    %7 = vector.broadcast %6 : vector<1x128xf32> to vector<64x128xf32>
    %8 = arith.addf %5, %7 : vector<64x128xf32>
    %cst_6 = arith.constant 0.000000e+00 : f32
    %9 = vector.broadcast %cst_6 : f32 to vector<64x128xf32>
    %10 = arith.maximumf %8, %9 : vector<64x128xf32>
    %c0_7 = arith.constant 0 : index
    %c0_8 = arith.constant 0 : index
    %11 = vector.load %arg8[%c0_7, %c0_8] : memref<64x128xf32, #tpu.memory_space<vmem>>, vector<64x128xf32>
    %c0_9 = arith.constant 0 : index
    %c0_10 = arith.constant 0 : index
    %12 = vector.load %arg5[%c0_9, %c0_10] : memref<128x128xf32, #tpu.memory_space<vmem>>, vector<128x128xf32>
    %cst_11 = arith.constant dense<0.000000e+00> : vector<64x128xf32>
    %13 = tpu.matmul %10, %12, %cst_11 {dimension_numbers = #tpu.dot_dimension_numbers<[1], [0], [0], [1], [0, 0, 1, 1], [], []>} : vector<64x128xf32>, vector<128x128xf32>, vector<64x128xf32> -> vector<64x128xf32>
    %14 = arith.addf %11, %13 : vector<64x128xf32>
    %c0_12 = arith.constant 0 : index
    %c0_13 = arith.constant 0 : index
    %15 = vector.load %arg8[%c0_12, %c0_13] : memref<64x128xf32, #tpu.memory_space<vmem>>, vector<64x128xf32>
    tpu.vector_store %arg8[%c0_12, %c0_13], %14 {strides = array<i32>} : memref<64x128xf32, #tpu.memory_space<vmem>>, vector<64x128xf32>,
    %c0_i32_14 = arith.constant 0 : i32
    %16 = arith.cmpi eq, %arg1, %c0_i32_14 : i32
    %17 = arith.extui %16 : i1 to i32
    %c0_i32_15 = arith.constant 0 : i32
    %18 = arith.cmpi ne, %17, %c0_i32_15 : i32
    scf.if %18 {
      %c0_16 = arith.constant 0 : index
      %c0_17 = arith.constant 0 : index
      %19 = vector.load %arg8[%c0_16, %c0_17] : memref<64x128xf32, #tpu.memory_space<vmem>>, vector<64x128xf32>
      %c0_18 = arith.constant 0 : index
      %c0_19 = arith.constant 0 : index
      %20 = vector.load %arg6[%c0_18, %c0_19] : memref<1x128xf32, #tpu.memory_space<vmem>>, vector<1x128xf32>
      %21 = vector.broadcast %20 : vector<1x128xf32> to vector<64x128xf32>
      %22 = arith.addf %19, %21 : vector<64x128xf32>
      %c0_20 = arith.constant 0 : index
      %c0_21 = arith.constant 0 : index
      %23 = vector.load %arg7[%c0_20, %c0_21] : memref<64x128xf32, #tpu.memory_space<vmem>>, vector<64x128xf32>
      tpu.vector_store %arg7[%c0_20, %c0_21], %22 {strides = array<i32>} : memref<64x128xf32, #tpu.memory_space<vmem>>, vector<64x128xf32>,
    } else {
    }
    return
  }
  func.func @transform_0(%arg0: i32, %arg1: i32) -> (i32, i32) {
    %c0_i32 = arith.constant 0 : i32
    %c0_i32_0 = arith.constant 0 : i32
    return %arg0, %c0_i32 : i32, i32
  }
  func.func @transform_1(%arg0: i32, %arg1: i32) -> (i32, i32) {
    %c0_i32 = arith.constant 0 : i32
    %c0_i32_0 = arith.constant 0 : i32
    %c0_i32_1 = arith.constant 0 : i32
    return %c0_i32, %c0_i32_0 : i32, i32
  }
  func.func @transform_2(%arg0: i32, %arg1: i32) -> (i32, i32) {
    %c0_i32 = arith.constant 0 : i32
    %c0_i32_0 = arith.constant 0 : i32
    %c0_i32_1 = arith.constant 0 : i32
    return %c0_i32, %c0_i32_0 : i32, i32
  }
  func.func @transform_3(%arg0: i32, %arg1: i32) -> (i32, i32) {
    %c0_i32 = arith.constant 0 : i32
    %c0_i32_0 = arith.constant 0 : i32
    %c0_i32_1 = arith.constant 0 : i32
    return %c0_i32, %c0_i32_0 : i32, i32
  }
  func.func @transform_4(%arg0: i32, %arg1: i32) -> (i32, i32) {
    %c0_i32 = arith.constant 0 : i32
    %c0_i32_0 = arith.constant 0 : i32
    %c0_i32_1 = arith.constant 0 : i32
    return %c0_i32, %c0_i32_0 : i32, i32
  }
  func.func @transform_5(%arg0: i32, %arg1: i32) -> (i32, i32) {
    %c0_i32 = arith.constant 0 : i32
    %c0_i32_0 = arith.constant 0 : i32
    return %arg0, %c0_i32 : i32, i32
  }
}

</mosaic_0001>

<llo_original>
// kernel: _svmnet_pallas.1
$region0: #{_svmnet_pallas.1}
  #allocation0 [shape = 'u32[]', space=smem, size = 0x4, offset = 0x4, fixed_abs, tag = 'smem constant byte address 0x4 - core index']
  #allocation1 [shape = 'u32[144,128]{1,0:T(1,128)}', space=vmem, size = 0x12000, scoped, tag = 'internal scratch']
  #allocation2 [shape = 'f32[64,128]{1,0:T(8,128)}', space=vmem, size = 0x8000, scoped, tag = 'scratch operand']
  %s0 = inlined_call_operand.vmem [shape: f32[200,32], index: 0, kind: input, shape index: {}]
  %s1 = inlined_call_operand.vmem [shape: f32[32,128], index: 1, kind: input, shape index: {}]
  %s2 = inlined_call_operand.vmem [shape: f32[1,128], index: 2, kind: input, shape index: {}]
  %s3 = inlined_call_operand.vmem [shape: f32[128,128], index: 3, kind: input, shape index: {}]
  %s4 = inlined_call_operand.vmem [shape: f32[1,128], index: 4, kind: input, shape index: {}]
  %s5 = inlined_call_operand.vmem [shape: f32[200,128], index: 5, kind: output, shape index: {}]
  %s6 = sld [smem:[#allocation0]]
  $region109: #{_svmnet_pallas.1} parent=0
    _
  %s8 = ssub.s32 1, %s6
  %s9 = scalar_select 0, %s8, %s6
  $region1: #{_svmnet_pallas.1} parent=0
    #allocation3 [shape = 'u8[65536]{0}', space=vmem, size = 0x10000, scoped, tag = 'output window, operand 0']
    loop: start=0, step=1, limit=6
    $region2: #{_svmnet_pallas.1} parent=1 // loop_pre_header
      _
    $region3: #{_svmnet_pallas.1} parent=1 // loop_header
      %s11 = sphi 0, %s15
      %p12 = scmp.ge.s32.totalorder %s11, 6
      %s18 = sphi 0, %s30
      %s19 = sphi 0, %s26
      %s20 = sphi 0, %s18
      %s21 = sphi 0, %s19
      %s22 = sphi 0, %s20
      %s23 = sphi 0, %s21
      %s33 = sphi 0, %s35
      %s36 = sphi 0, %s33
      %s37 = sphi 0, %s36
      %s53 = sphi 0, %s37
      %s57 = sphi 0, %s57
      %s59 = sphi 0, %s57
      %s60 = sphi 0, %s59
      %s74 = sphi 0, %s60
      %s78 = sphi 0, %s78
      %s80 = sphi 0, %s78
      %s81 = sphi 0, %s80
      %s95 = sphi 0, %s81
      %s99 = sphi 0, %s99
      %s101 = sphi 0, %s99
      %s102 = sphi 0, %s101
      %s116 = sphi 0, %s102
      %s120 = sphi 0, %s120
      %s122 = sphi 0, %s120
      %s123 = sphi 0, %s122
      %s137 = sphi 0, %s123
      %s143 = sphi 0, %s145
      %s146 = sphi 0, %s143
      %s147 = sphi 0, %s146
      %s163 = sphi 0, %s147
    $region4: #{_svmnet_pallas.1} parent=1 // loop_header_branch
      %14 = sbr.rel (%p12) target = $region8
    $region5: #{_svmnet_pallas.1} parent=1 // loop_body
      %s16 = ssub.s32 %s11, 1
      %s17 = ssub.s32 %s11, 2
      %s24 = sadd.s32 1, %s19
      %p25 = scmp.ge.s32.totalorder %s24, 1
      %s26 = scalar_select %p25, 0, %s24
      %s27 = sadd.s32 1, %s18
      %s28 = scalar_select %p25, %s27, %s18
      %p29 = scmp.ge.s32.totalorder %s28, 4
      %s30 = scalar_select %p29, 0, %s28
      %s31 = ssub.s32 %s18, %s30
      %p32 = scmp.eq.s32.totalorder %s31, 0
      %s34 = sadd.s32 %s33, 1
      %s35 = scalar_select %p32, %s33, %s34
      %p38 = pneg %p32
      %p39 = scmp.eq.s32.totalorder %s11, 3
      %p40 = por %p38, %p39
      %p41 = scmp.ne.s32.totalorder %s33, %s36
      %p42 = scmp.eq.s32.totalorder %s11, 0
      %p43 = por %p41, %p42
      %p44 = scmp.ne.s32.totalorder %s33, %s36
      %p45 = scmp.eq.s32.totalorder %s16, 3
      %p46 = por %p44, %p45
      %p47 = scmp.ne.s32.totalorder %s36, %s37
      %p48 = scmp.eq.s32.totalorder %s16, 0
      %p49 = por %p47, %p48
      %p50 = scmp.ne.s32.totalorder %s36, %s37
      %p51 = scmp.eq.s32.totalorder %s17, 3
      %p52 = por %p50, %p51
      %p54 = scmp.ne.s32.totalorder %s37, %s53
      %p55 = scmp.eq.s32.totalorder %s17, 0
      %p56 = por %p54, %p55
      %s58 = sadd.s32 %s57, 1
      %p61 = scmp.eq.s32.totalorder %s11, 3
      %p62 = scmp.ne.s32.totalorder %s57, %s59
      %p63 = scmp.eq.s32.totalorder %s11, 0
      %p64 = por %p62, %p63
      %p65 = scmp.ne.s32.totalorder %s57, %s59
      %p66 = scmp.eq.s32.totalorder %s16, 3
      %p67 = por %p65, %p66
      %p68 = scmp.ne.s32.totalorder %s59, %s60
      %p69 = scmp.eq.s32.totalorder %s16, 0
      %p70 = por %p68, %p69
      %p71 = scmp.ne.s32.totalorder %s59, %s60
      %p72 = scmp.eq.s32.totalorder %s17, 3
      %p73 = por %p71, %p72
      %p75 = scmp.ne.s32.totalorder %s60, %s74
      %p76 = scmp.eq.s32.totalorder %s17, 0
      %p77 = por %p75, %p76
      %s79 = sadd.s32 %s78, 1
      %p82 = scmp.eq.s32.totalorder %s11, 3
      %p83 = scmp.ne.s32.totalorder %s78, %s80
      %p84 = scmp.eq.s32.totalorder %s11, 0
      %p85 = por %p83, %p84
      %p86 = scmp.ne.s32.totalorder %s78, %s80
      %p87 = scmp.eq.s32.totalorder %s16, 3
      %p88 = por %p86, %p87
      %p89 = scmp.ne.s32.totalorder %s80, %s81
      %p90 = scmp.eq.s32.totalorder %s16, 0
      %p91 = por %p89, %p90
      %p92 = scmp.ne.s32.totalorder %s80, %s81
      %p93 = scmp.eq.s32.totalorder %s17, 3
      %p94 = por %p92, %p93
      %p96 = scmp.ne.s32.totalorder %s81, %s95
      %p97 = scmp.eq.s32.totalorder %s17, 0
      %p98 = por %p96, %p97
      %s100 = sadd.s32 %s99, 1
      %p103 = scmp.eq.s32.totalorder %s11, 3
      %p104 = scmp.ne.s32.totalorder %s99, %s101
      %p105 = scmp.eq.s32.totalorder %s11, 0
      %p106 = por %p104, %p105
      %p107 = scmp.ne.s32.totalorder %s99, %s101
      %p108 = scmp.eq.s32.totalorder %s16, 3
      %p109 = por %p107, %p108
      %p110 = scmp.ne.s32.totalorder %s101, %s102
      %p111 = scmp.eq.s32.totalorder %s16, 0
      %p112 = por %p110, %p111
      %p113 = scmp.ne.s32.totalorder %s101, %s102
      %p114 = scmp.eq.s32.totalorder %s17, 3
      %p115 = por %p113, %p114
      %p117 = scmp.ne.s32.totalorder %s102, %s116
      %p118 = scmp.eq.s32.totalorder %s17, 0
      %p119 = por %p117, %p118
      %s121 = sadd.s32 %s120, 1
      %p124 = scmp.eq.s32.totalorder %s11, 3
      %p125 = scmp.ne.s32.totalorder %s120, %s122
      %p126 = scmp.eq.s32.totalorder %s11, 0
      %p127 = por %p125, %p126
      %p128 = scmp.ne.s32.totalorder %s120, %s122
      %p129 = scmp.eq.s32.totalorder %s16, 3
      %p130 = por %p128, %p129
      %p131 = scmp.ne.s32.totalorder %s122, %s123
      %p132 = scmp.eq.s32.totalorder %s16, 0
      %p133 = por %p131, %p132
      %p134 = scmp.ne.s32.totalorder %s122, %s123
      %p135 = scmp.eq.s32.totalorder %s17, 3
      %p136 = por %p134, %p135
      %p138 = scmp.ne.s32.totalorder %s123, %s137
      %p139 = scmp.eq.s32.totalorder %s17, 0
      %p140 = por %p138, %p139
      %s141 = ssub.s32 %s18, %s30
      %p142 = scmp.eq.s32.totalorder %s141, 0
      %s144 = sadd.s32 %s143, 1
      %s145 = scalar_select %p142, %s143, %s144
      %p148 = pneg %p142
      %p149 = scmp.eq.s32.totalorder %s11, 3
      %p150 = por %p148, %p149
      %p151 = scmp.ne.s32.totalorder %s143, %s146
      %p152 = scmp.eq.s32.totalorder %s11, 0
      %p153 = por %p151, %p152
      %p154 = scmp.ne.s32.totalorder %s143, %s146
      %p155 = scmp.eq.s32.totalorder %s16, 3
      %p156 = por %p154, %p155
      %p157 = scmp.ne.s32.totalorder %s146, %s147
      %p158 = scmp.eq.s32.totalorder %s16, 0
      %p159 = por %p157, %p158
      %p160 = scmp.ne.s32.totalorder %s146, %s147
      %p161 = scmp.eq.s32.totalorder %s17, 3
      %p162 = por %p160, %p161
      %p164 = scmp.ne.s32.totalorder %s147, %s163
      %p165 = scmp.eq.s32.totalorder %s17, 0
      %p166 = por %p164, %p165
      %p167 = scmp.le.s32.totalorder 1, %s11
      %p168 = scmp.lt.s32.totalorder %s11, 5
      %p169 = pnand %p167, %p168
      %p170 = pneg %p169
      // Predicated region
      $region9: #{_svmnet_pallas.1} parent=5 // pred_check
        _
      $region10: #{_svmnet_pallas.1} parent=5 // pred_check_branch
        %172 = sbr.rel (%p169) target = $region12
      $region11: #{_svmnet_pallas.1} parent=5 // pred_region
        %s173 = ssub.s32 %s11, 1
        // Predicated region
        $region13: #{_svmnet_pallas.1} parent=11 // pred_check
          %p174 = pneg %p70
        $region14: #{_svmnet_pallas.1} parent=11 // pred_check_branch
          %176 = sbr.rel (%p174) target = $region16
        $region15: #{_svmnet_pallas.1} parent=11 // pred_region
          _
        $region16: #{_svmnet_pallas.1} parent=11 // pred_fallthru
          _
        // Predicated region
        $region17: #{_svmnet_pallas.1} parent=11 // pred_check
          %p177 = pneg %p91
        $region18: #{_svmnet_pallas.1} parent=11 // pred_check_branch
          %179 = sbr.rel (%p177) target = $region20
        $region19: #{_svmnet_pallas.1} parent=11 // pred_region
          _
        $region20: #{_svmnet_pallas.1} parent=11 // pred_fallthru
          _
        // Predicated region
        $region21: #{_svmnet_pallas.1} parent=11 // pred_check
          %p180 = pneg %p112
        $region22: #{_svmnet_pallas.1} parent=11 // pred_check_branch
          %182 = sbr.rel (%p180) target = $region24
        $region23: #{_svmnet_pallas.1} parent=11 // pred_region
          _
        $region24: #{_svmnet_pallas.1} parent=11 // pred_fallthru
          _
        // Predicated region
        $region25: #{_svmnet_pallas.1} parent=11 // pred_check
          %p183 = pneg %p133
        $region26: #{_svmnet_pallas.1} parent=11 // pred_check_branch
          %185 = sbr.rel (%p183) target = $region28
        $region27: #{_svmnet_pallas.1} parent=11 // pred_region
          _
        $region28: #{_svmnet_pallas.1} parent=11 // pred_fallthru
          _
      $region12: #{_svmnet_pallas.1} parent=5 // pred_fallthru
        _
      %p186 = scmp.lt.s32.totalorder %s11, 4
      // Predicated region
      $region29: #{_svmnet_pallas.1} parent=5 // pred_check
        %p187 = pneg %p186
      $region30: #{_svmnet_pallas.1} parent=5 // pred_check_branch
        %189 = sbr.rel (%p187) target = $region32
      $region31: #{_svmnet_pallas.1} parent=5 // pred_region
        // Predicated region
        $region33: #{_svmnet_pallas.1} parent=31 // pred_check
          %p190 = pneg %p43
        $region34: #{_svmnet_pallas.1} parent=31 // pred_check_branch
          %192 = sbr.rel (%p190) target = $region36
        $region35: #{_svmnet_pallas.1} parent=31 // pred_region
          %s193 = smul.u32 8, %s18
          %s194 = ssub.s32 25, %s193
          %p195 = scmp.lt.s32.totalorder %s194, 8
          %s196 = scalar_select %p195, %s194, 8
          %s197 = smul.u32 128, %s196
          %p198 = scmp.lt.s32.totalorder %s193, 24
          %s199 = scalar_select %p198, %s193, 24
          %s200 = smul.addr %s199, 8
          %s201 = scalar_lea.vmem %s0, %s200
          %s202 = smul.u32 8, %s18
          %s203 = ssub.s32 25, %s202
          %p204 = scmp.lt.s32.totalorder %s203, 8
          %s205 = scalar_select %p204, %s203, 8
          %s206 = smul.u32 128, %s205
        $region36: #{_svmnet_pallas.1} parent=31 // pred_fallthru
          _
      $region32: #{_svmnet_pallas.1} parent=5 // pred_fallthru
        _
      %p207 = scmp.le.s32.totalorder 1, %s11
      %p208 = scmp.lt.s32.totalorder %s11, 5
      %p209 = pnand %p207, %p208
      %p210 = pneg %p209
      // Predicated region
      $region37: #{_svmnet_pallas.1} parent=5 // pred_check
        _
      $region38: #{_svmnet_pallas.1} parent=5 // pred_check_branch
        %212 = sbr.rel (%p209) target = $region40
      $region39: #{_svmnet_pallas.1} parent=5 // pred_region
        %s213 = ssub.s32 %s11, 1
        %s214 = smul.u32 8, %s20
        %s215 = ssub.s32 25, %s214
        %p216 = scmp.lt.s32.totalorder %s215, 8
        %s217 = scalar_select %p216, %s215, 8
        %s218 = smul.u32 128, %s217
        %p219 = scmp.lt.s32.totalorder %s214, 24
        %s220 = scalar_select %p219, %s214, 24
        %s221 = smul.addr %s220, 8
        %s222 = scalar_lea.vmem %s0, %s221
        %p223 = pneg %p49
        %p224 = pneg %p46
        %p225 = pneg %p70
        %p226 = pneg %p67
        %p227 = pneg %p91
        %p228 = pneg %p88
        %p229 = pneg %p112
        %p230 = pneg %p109
        %p231 = pneg %p133
        %p232 = pneg %p130
        %p233 = pneg %p159
        %p234 = pneg %p156
        %s235 = sand.u32 %s146, 1
        %s236 = sand.u32 %s146, 1
        %s237 = smul.addr %s236, 64
        %s238 = scalar_lea.vmem [#allocation3], %s237
        %s239 = smul.u32 8, %s20
        %s240 = ssub.s32 25, %s239
        %p241 = scmp.lt.s32.totalorder %s240, 8
        %s242 = scalar_select %p241, %s240, 8
        %s243 = smul.u32 128, %s242
        %p244 = scmp.lt.s32.totalorder %s239, 24
        %s245 = scalar_select %p244, %s239, 24
        %s246 = smul.addr %s245, 8
        %s247 = scalar_lea.vmem %s0, %s246
        %s248 = smul.u32 8, %s20
        %s249 = ssub.s32 25, %s248
        %p250 = scmp.lt.s32.totalorder %s249, 8
        %s251 = scalar_select %p250, %s249, 8
        %s252 = smul.u32 128, %s251
        %s253 = smul.u32 8, %s20
        %s254 = ssub.s32 25, %s253
        %p255 = scmp.lt.s32.totalorder %s254, 8
        %s256 = scalar_select %p255, %s254, 8
        %s257 = smul.u32 128, %s256
        %p258 = scmp.eq.s32.totalorder %s21, 0
        // Predicated region
        $region41: #{_svmnet_pallas.1} parent=39 // pred_check
          %p259 = pneg %p258
        $region42: #{_svmnet_pallas.1} parent=39 // pred_check_branch
          %261 = sbr.rel (%p259) target = $region44
        $region43: #{_svmnet_pallas.1} parent=39 // pred_region
          %262 = vst [vmem:[#allocation2] sm:$0xff] 0.0
          %263 = vst [vmem:[#allocation2 + $0x8] sm:$0xff] 0.0
          %264 = vst [vmem:[#allocation2 + $0x10] sm:$0xff] 0.0
          %265 = vst [vmem:[#allocation2 + $0x18] sm:$0xff] 0.0
          %266 = vst [vmem:[#allocation2 + $0x20] sm:$0xff] 0.0
          %267 = vst [vmem:[#allocation2 + $0x28] sm:$0xff] 0.0
          %268 = vst [vmem:[#allocation2 + $0x30] sm:$0xff] 0.0
          %269 = vst [vmem:[#allocation2 + $0x38] sm:$0xff] 0.0
        $region44: #{_svmnet_pallas.1} parent=39 // pred_fallthru
          _
        %v270 = vld [vmem:[%s247] sm:$0xff]
        %v271 = vld [vmem:[%s247 + $0x8] sm:$0xff]
        %v272 = vld [vmem:[%s247 + $0x10] sm:$0xff]
        %v273 = vld [vmem:[%s247 + $0x18] sm:$0xff]
        %v274 = vld [vmem:[%s247 + $0x20] sm:$0xff]
        %v275 = vld [vmem:[%s247 + $0x28] sm:$0xff]
        %v276 = vld [vmem:[%s247 + $0x30] sm:$0xff]
        %v277 = vld [vmem:[%s247 + $0x38] sm:$0xff]
        %v278 = vld [vmem:[%s1] sm:$0xff]
        %v279 = vld [vmem:[%s1 + $0x8] sm:$0xff]
        %v280 = vld [vmem:[%s1 + $0x10] sm:$0xff]
        %v281 = vld [vmem:[%s1 + $0x18] sm:$0xff]
        %v282 = vld [vmem:[%s2] sm:$0x1]
        %v284 = vlaneseq
        %v285 = vshrl.u32 %v284, 7
        %v286 = vsub.s32 0, %v285
        %v287 = vrot.slane %v282, %v286
        %vm289 = vcmask 261120
        %v291 = vsel %vm289, %v270, 0
        %v294 = vsel %vm289, %v271, 0
        %v297 = vsel %vm289, %v272, 0
        %v300 = vsel %vm289, %v273, 0
        %v303 = vsel %vm289, %v274, 0
        %v306 = vsel %vm289, %v275, 0
        %v309 = vsel %vm289, %v276, 0
        %v312 = vsel %vm289, %v277, 0
        %314 = vmatprep.subr.mxu0 0.0
        %315 = vmatpush1.msra.mxu0 0.0
        %316 = vmatprep.subr.mxu0 0.0
        %317 = vmatpush1.msra.mxu0 0.0
        %318 = vmatprep.subr.mxu0 0.0
        %319 = vmatpush1.msra.mxu0 0.0
        %320 = vmatprep.subr.mxu0 0.0
        %321 = vmatpush1.msra.mxu0 0.0
        %322 = vmatprep.subr.mxu0 0.0
        %323 = vmatpush1.msra.mxu0 0.0
        %324 = vmatprep.subr.mxu0 0.0
        %325 = vmatpush1.msra.mxu0 0.0
        %326 = vmatprep.subr.mxu0 0.0
        %327 = vmatpush1.msra.mxu0 0.0
        %328 = vmatprep.subr.mxu0 0.0
        %329 = vmatpush1.msra.mxu0 0.0
        %330 = vmatprep.subr.mxu0 0.0
        %331 = vmatpush1.msra.mxu0 0.0
        %332 = vmatprep.subr.mxu0 0.0
        %333 = vmatpush1.msra.mxu0 0.0
        %334 = vmatprep.subr.mxu0 0.0
        %335 = vmatpush1.msra.mxu0 0.0
        %336 = vmatprep.subr.mxu0 0.0
        %337 = vmatpush1.msra.mxu0 0.0
        %338 = vmatprep.subr.mxu0 0.0
        %339 = vmatpush1.msra.mxu0 %v281
        %340 = vmatprep.subr.mxu0 0.0
        %341 = vmatpush1.msra.mxu0 %v280
        %342 = vmatprep.subr.mxu0 0.0
        %343 = vmatpush1.msra.mxu0 %v279
        %344 = vmatprep.subr.mxu0 0.0
        %345 = vmatpush1.msra.mxu0 %v278
        %346 = vmatprep.subr.mxu0 0.0
        %347 = vmatpush2.msra.mxu0 0.0
        %348 = vmatprep.subr.mxu0 0.0
        %349 = vmatpush2.msra.mxu0 0.0
        %350 = vmatprep.subr.mxu0 0.0
        %351 = vmatpush2.msra.mxu0 0.0
        %352 = vmatprep.subr.mxu0 0.0
        %353 = vmatpush2.msra.mxu0 0.0
        %354 = vmatprep.subr.mxu0 0.0
        %355 = vmatpush2.msra.mxu0 0.0
        %356 = vmatprep.subr.mxu0 0.0
        %357 = vmatpush2.msra.mxu0 0.0
        %358 = vmatprep.subr.mxu0 0.0
        %359 = vmatpush2.msra.mxu0 0.0
        %360 = vmatprep.subr.mxu0 0.0
        %361 = vmatpush2.msra.mxu0 0.0
        %362 = vmatprep.subr.mxu0 0.0
        %363 = vmatpush2.msra.mxu0 0.0
        %364 = vmatprep.subr.mxu0 0.0
        %365 = vmatpush2.msra.mxu0 0.0
        %366 = vmatprep.subr.mxu0 0.0
        %367 = vmatpush2.msra.mxu0 0.0
        %368 = vmatprep.subr.mxu0 0.0
        %369 = vmatpush2.msra.mxu0 0.0
        %370 = vmatprep.subr.mxu0 0.0
        %371 = vmatpush2.msra.mxu0 0.0
        %372 = vmatprep.subr.mxu0 0.0
        %373 = vmatpush2.msra.mxu0 0.0
        %374 = vmatprep.subr.mxu0 0.0
        %375 = vmatpush2.msra.mxu0 0.0
        %376 = vmatprep.subr.mxu0 0.0
        %377 = vmatpush2.msra.mxu0 0.0
        %378 = vmatprep.mubr.f32.mxu0 0.0
        %379 = vmatmul.mubr.f32.gmra.mxu0 %v291
        %v380 = vpop.f32.mrf.mxu0
        %v381 = vadd.f32 %v287, %v380
        %v382 = vpop.f32.mrf.mxu0
        %383 = vmatprep.mubr.f32.mxu0 0.0
        %384 = vmatmul.mubr.f32.gmra.mxu0 %v294
        %v385 = vpop.f32.mrf.mxu0
        %v386 = vadd.f32 %v287, %v385
        %v387 = vpop.f32.mrf.mxu0
        %388 = vmatprep.mubr.f32.mxu0 0.0
        %389 = vmatmul.mubr.f32.gmra.mxu0 %v297
        %v390 = vpop.f32.mrf.mxu0
        %v391 = vadd.f32 %v287, %v390
        %v392 = vpop.f32.mrf.mxu0
        %393 = vmatprep.mubr.f32.mxu0 0.0
        %394 = vmatmul.mubr.f32.gmra.mxu0 %v300
        %v395 = vpop.f32.mrf.mxu0
        %v396 = vadd.f32 %v287, %v395
        %v397 = vpop.f32.mrf.mxu0
        %398 = vmatprep.mubr.f32.mxu0 0.0
        %399 = vmatmul.mubr.f32.gmra.mxu0 %v303
        %v400 = vpop.f32.mrf.mxu0
        %v401 = vadd.f32 %v287, %v400
        %v402 = vpop.f32.mrf.mxu0
        %403 = vmatprep.mubr.f32.mxu0 0.0
        %404 = vmatmul.mubr.f32.gmra.mxu0 %v306
        %v405 = vpop.f32.mrf.mxu0
        %v406 = vadd.f32 %v287, %v405
        %v407 = vpop.f32.mrf.mxu0
        %408 = vmatprep.mubr.f32.mxu0 0.0
        %409 = vmatmul.mubr.f32.gmra.mxu0 %v309
        %v410 = vpop.f32.mrf.mxu0
        %v411 = vadd.f32 %v287, %v410
        %v412 = vpop.f32.mrf.mxu0
        %413 = vmatprep.mubr.f32.mxu0 0.0
        %414 = vmatmul.mubr.f32.gmra.mxu0 %v312
        %v415 = vpop.f32.mrf.mxu0
        %v416 = vadd.f32 %v287, %v415
        %v417 = vpop.f32.mrf.mxu0
        %418 = vdwg.mxu0
        %v419 = vmax.f32 %v381, 0.0
        %v420 = vmax.f32 %v386, 0.0
        %v421 = vmax.f32 %v391, 0.0
        %v422 = vmax.f32 %v396, 0.0
        %v423 = vmax.f32 %v401, 0.0
        %v424 = vmax.f32 %v406, 0.0
        %v425 = vmax.f32 %v411, 0.0
        %v426 = vmax.f32 %v416, 0.0
        %v427 = vld [vmem:[#allocation2] sm:$0xff]
        %v428 = vld [vmem:[#allocation2 + $0x8] sm:$0xff]
        %v429 = vld [vmem:[#allocation2 + $0x10] sm:$0xff]
        %v430 = vld [vmem:[#allocation2 + $0x18] sm:$0xff]
        %v431 = vld [vmem:[#allocation2 + $0x20] sm:$0xff]
        %v432 = vld [vmem:[#allocation2 + $0x28] sm:$0xff]
        %v433 = vld [vmem:[#allocation2 + $0x30] sm:$0xff]
        %v434 = vld [vmem:[#allocation2 + $0x38] sm:$0xff]
        %v435 = vld [vmem:[%s3] sm:$0xff]
        %v436 = vld [vmem:[%s3 + $0x8] sm:$0xff]
        %v437 = vld [vmem:[%s3 + $0x10] sm:$0xff]
        %v438 = vld [vmem:[%s3 + $0x18] sm:$0xff]
        %v439 = vld [vmem:[%s3 + $0x20] sm:$0xff]
        %v440 = vld [vmem:[%s3 + $0x28] sm:$0xff]
        %v441 = vld [vmem:[%s3 + $0x30] sm:$0xff]
        %v442 = vld [vmem:[%s3 + $0x38] sm:$0xff]
        %v443 = vld [vmem:[%s3 + $0x40] sm:$0xff]
        %v444 = vld [vmem:[%s3 + $0x48] sm:$0xff]
        %v445 = vld [vmem:[%s3 + $0x50] sm:$0xff]
        %v446 = vld [vmem:[%s3 + $0x58] sm:$0xff]
        %v447 = vld [vmem:[%s3 + $0x60] sm:$0xff]
        %v448 = vld [vmem:[%s3 + $0x68] sm:$0xff]
        %v449 = vld [vmem:[%s3 + $0x70] sm:$0xff]
        %v450 = vld [vmem:[%s3 + $0x78] sm:$0xff]
        %451 = vmatprep.subr.mxu0 0.0
        %452 = vmatpush1.msra.mxu0 %v450
        %453 = vmatprep.subr.mxu0 0.0
        %454 = vmatpush1.msra.mxu0 %v449
        %455 = vmatprep.subr.mxu0 0.0
        %456 = vmatpush1.msra.mxu0 %v448
        %457 = vmatprep.subr.mxu0 0.0
        %458 = vmatpush1.msra.mxu0 %v447
        %459 = vmatprep.subr.mxu0 0.0
        %460 = vmatpush1.msra.mxu0 %v446
        %461 = vmatprep.subr.mxu0 0.0
        %462 = vmatpush1.msra.mxu0 %v445
        %463 = vmatprep.subr.mxu0 0.0
        %464 = vmatpush1.msra.mxu0 %v444
        %465 = vmatprep.subr.mxu0 0.0
        %466 = vmatpush1.msra.mxu0 %v443
        %467 = vmatprep.subr.mxu0 0.0
        %468 = vmatpush1.msra.mxu0 %v442
        %469 = vmatprep.subr.mxu0 0.0
        %470 = vmatpush1.msra.mxu0 %v441
        %471 = vmatprep.subr.mxu0 0.0
        %472 = vmatpush1.msra.mxu0 %v440
        %473 = vmatprep.subr.mxu0 0.0
        %474 = vmatpush1.msra.mxu0 %v439
        %475 = vmatprep.subr.mxu0 0.0
        %476 = vmatpush1.msra.mxu0 %v438
        %477 = vmatprep.subr.mxu0 0.0
        %478 = vmatpush1.msra.mxu0 %v437
        %479 = vmatprep.subr.mxu0 0.0
        %480 = vmatpush1.msra.mxu0 %v436
        %481 = vmatprep.subr.mxu0 0.0
        %482 = vmatpush1.msra.mxu0 %v435
        %483 = vmatprep.subr.mxu0 0.0
        %484 = vmatpush2.msra.mxu0 0.0
        %485 = vmatprep.subr.mxu0 0.0
        %486 = vmatpush2.msra.mxu0 0.0
        %487 = vmatprep.subr.mxu0 0.0
        %488 = vmatpush2.msra.mxu0 0.0
        %489 = vmatprep.subr.mxu0 0.0
        %490 = vmatpush2.msra.mxu0 0.0
        %491 = vmatprep.subr.mxu0 0.0
        %492 = vmatpush2.msra.mxu0 0.0
        %493 = vmatprep.subr.mxu0 0.0
        %494 = vmatpush2.msra.mxu0 0.0
        %495 = vmatprep.subr.mxu0 0.0
        %496 = vmatpush2.msra.mxu0 0.0
        %497 = vmatprep.subr.mxu0 0.0
        %498 = vmatpush2.msra.mxu0 0.0
        %499 = vmatprep.subr.mxu0 0.0
        %500 = vmatpush2.msra.mxu0 0.0
        %501 = vmatprep.subr.mxu0 0.0
        %502 = vmatpush2.msra.mxu0 0.0
        %503 = vmatprep.subr.mxu0 0.0
        %504 = vmatpush2.msra.mxu0 0.0
        %505 = vmatprep.subr.mxu0 0.0
        %506 = vmatpush2.msra.mxu0 0.0
        %507 = vmatprep.subr.mxu0 0.0
        %508 = vmatpush2.msra.mxu0 0.0
        %509 = vmatprep.subr.mxu0 0.0
        %510 = vmatpush2.msra.mxu0 0.0
        %511 = vmatprep.subr.mxu0 0.0
        %512 = vmatpush2.msra.mxu0 0.0
        %513 = vmatprep.subr.mxu0 0.0
        %514 = vmatpush2.msra.mxu0 0.0
        %515 = vmatprep.mubr.f32.mxu0 0.0
        %516 = vmatmul.mubr.f32.gmra.mxu0 %v419
        %v517 = vpop.f32.mrf.mxu0
        %v518 = vadd.f32 0.0, %v517
        %v519 = vpop.f32.mrf.mxu0
        %520 = vmatprep.mubr.f32.mxu0 0.0
        %521 = vmatmul.mubr.f32.gmra.mxu0 %v420
        %v522 = vpop.f32.mrf.mxu0
        %v523 = vadd.f32 0.0, %v522
        %v524 = vpop.f32.mrf.mxu0
        %525 = vmatprep.mubr.f32.mxu0 0.0
        %526 = vmatmul.mubr.f32.gmra.mxu0 %v421
        %v527 = vpop.f32.mrf.mxu0
        %v528 = vadd.f32 0.0, %v527
        %v529 = vpop.f32.mrf.mxu0
        %530 = vmatprep.mubr.f32.mxu0 0.0
        %531 = vmatmul.mubr.f32.gmra.mxu0 %v422
        %v532 = vpop.f32.mrf.mxu0
        %v533 = vadd.f32 0.0, %v532
        %v534 = vpop.f32.mrf.mxu0
        %535 = vmatprep.mubr.f32.mxu0 0.0
        %536 = vmatmul.mubr.f32.gmra.mxu0 %v423
        %v537 = vpop.f32.mrf.mxu0
        %v538 = vadd.f32 0.0, %v537
        %v539 = vpop.f32.mrf.mxu0
        %540 = vmatprep.mubr.f32.mxu0 0.0
        %541 = vmatmul.mubr.f32.gmra.mxu0 %v424
        %v542 = vpop.f32.mrf.mxu0
        %v543 = vadd.f32 0.0, %v542
        %v544 = vpop.f32.mrf.mxu0
        %545 = vmatprep.mubr.f32.mxu0 0.0
        %546 = vmatmul.mubr.f32.gmra.mxu0 %v425
        %v547 = vpop.f32.mrf.mxu0
        %v548 = vadd.f32 0.0, %v547
        %v549 = vpop.f32.mrf.mxu0
        %550 = vmatprep.mubr.f32.mxu0 0.0
        %551 = vmatmul.mubr.f32.gmra.mxu0 %v426
        %v552 = vpop.f32.mrf.mxu0
        %v553 = vadd.f32 0.0, %v552
        %v554 = vpop.f32.mrf.mxu0
        %555 = vdwg.mxu0
        %v556 = vadd.f32 %v427, %v518
        %v557 = vadd.f32 %v428, %v523
        %v558 = vadd.f32 %v429, %v528
        %v559 = vadd.f32 %v430, %v533
        %v560 = vadd.f32 %v431, %v538
        %v561 = vadd.f32 %v432, %v543
        %v562 = vadd.f32 %v433, %v548
        %v563 = vadd.f32 %v434, %v553
        %564 = vst [vmem:[#allocation2] sm:$0xff] %v556
        %565 = vst [vmem:[#allocation2 + $0x8] sm:$0xff] %v557
        %566 = vst [vmem:[#allocation2 + $0x10] sm:$0xff] %v558
        %567 = vst [vmem:[#allocation2 + $0x18] sm:$0xff] %v559
        %568 = vst [vmem:[#allocation2 + $0x20] sm:$0xff] %v560
        %569 = vst [vmem:[#allocation2 + $0x28] sm:$0xff] %v561
        %570 = vst [vmem:[#allocation2 + $0x30] sm:$0xff] %v562
        %571 = vst [vmem:[#allocation2 + $0x38] sm:$0xff] %v563
        // Predicated region
        $region45: #{_svmnet_pallas.1} parent=39 // pred_check
          %p572 = pneg %p258
        $region46: #{_svmnet_pallas.1} parent=39 // pred_check_branch
          %574 = sbr.rel (%p572) target = $region48
        $region47: #{_svmnet_pallas.1} parent=39 // pred_region
          %v575 = vld [vmem:[#allocation2] sm:$0xff]
          %v576 = vld [vmem:[#allocation2 + $0x8] sm:$0xff]
          %v577 = vld [vmem:[#allocation2 + $0x10] sm:$0xff]
          %v578 = vld [vmem:[#allocation2 + $0x18] sm:$0xff]
          %v579 = vld [vmem:[#allocation2 + $0x20] sm:$0xff]
          %v580 = vld [vmem:[#allocation2 + $0x28] sm:$0xff]
          %v581 = vld [vmem:[#allocation2 + $0x30] sm:$0xff]
          %v582 = vld [vmem:[#allocation2 + $0x38] sm:$0xff]
          %v583 = vld [vmem:[%s4] sm:$0x1]
          %v585 = vlaneseq
          %v586 = vshrl.u32 %v585, 7
          %v587 = vsub.s32 0, %v586
          %v588 = vrot.slane %v583, %v587
          %v590 = vadd.f32 %v575, %v588
          %v591 = vadd.f32 %v576, %v588
          %v592 = vadd.f32 %v577, %v588
          %v593 = vadd.f32 %v578, %v588
          %v594 = vadd.f32 %v579, %v588
          %v595 = vadd.f32 %v580, %v588
          %v596 = vadd.f32 %v581, %v588
          %v597 = vadd.f32 %v582, %v588
          %598 = vst [vmem:[%s238] sm:$0xff] %v590
          %599 = vst [vmem:[%s238 + $0x8] sm:$0xff] %v591
          %600 = vst [vmem:[%s238 + $0x10] sm:$0xff] %v592
          %601 = vst [vmem:[%s238 + $0x18] sm:$0xff] %v593
          %602 = vst [vmem:[%s238 + $0x20] sm:$0xff] %v594
          %603 = vst [vmem:[%s238 + $0x28] sm:$0xff] %v595
          %604 = vst [vmem:[%s238 + $0x30] sm:$0xff] %v596
          %605 = vst [vmem:[%s238 + $0x38] sm:$0xff] %v597
        $region48: #{_svmnet_pallas.1} parent=39 // pred_fallthru
          _
        %s606 = sand.u32 %s146, 1
        %s607 = sand.u32 %s146, 1
        %s608 = smul.addr %s607, 64
        %s609 = scalar_lea.vmem [#allocation3], %s608
        // Predicated region
        $region49: #{_svmnet_pallas.1} parent=39 // pred_check
          %p610 = pneg %p156
        $region50: #{_svmnet_pallas.1} parent=39 // pred_check_branch
          %612 = sbr.rel (%p610) target = $region52
        $region51: #{_svmnet_pallas.1} parent=39 // pred_region
          %s613 = smul.u32 8, %s20
          %s614 = ssub.s32 25, %s613
          %p615 = scmp.lt.s32.totalorder %s614, 8
          %s616 = scalar_select %p615, %s614, 8
          %s617 = smul.u32 128, %s616
          %p618 = scmp.ne.s32.totalorder 0, %s617
          %s619 = smul.addr %s613, 8
          %s620 = scalar_lea.vmem %s5, %s619
          // Predicated region
          $region53: #{_svmnet_pallas.1} parent=51 // pred_check
            %p621 = pneg %p618
          $region54: #{_svmnet_pallas.1} parent=51 // pred_check_branch
            %623 = sbr.rel (%p621) target = $region56
          $region55: #{_svmnet_pallas.1} parent=51 // pred_region
            // Predicated region
            $region57: #{_svmnet_pallas.1} parent=55 // pred_check
              _
            $region58: #{_svmnet_pallas.1} parent=55 // pred_check_branch
              %625 = sbr.rel (0) target = $region60
            $region59: #{_svmnet_pallas.1} parent=55 // pred_region
              // Predicated region
              $region79: #{_svmnet_pallas.1} parent=59 // pred_check
                _
              $region80: #{_svmnet_pallas.1} parent=59 // pred_check_branch
                %689 = sbr.rel (0) target = $region82
              $region81: #{_svmnet_pallas.1} parent=59 // pred_region
                %s690 = sshrl.u32 %s616, 3
                // While loop
                $region83: #{_svmnet_pallas.1} parent=81 // loop_pre_header
                  _
                $region84: #{_svmnet_pallas.1} parent=81 // loop_header
                  %s692 = sphi 0, %s694
                  %p693 = scmp.ge.s32.totalorder %s692, %s690
                  %s697 = sphi 0, %s718
                  %s698 = sphi %s609, %s721
                  %s699 = sphi %s620, %s722
                $region85: #{_svmnet_pallas.1} parent=81 // loop_header_branch
                  %696 = sbr.rel (%p693) target = $region89
                $region86: #{_svmnet_pallas.1} parent=81 // loop_body
                  %v700 = vld [vmem:[%s698] sm:$0xff]
                  %701 = vst [vmem:[%s699] sm:$0xff] %v700
                  %v702 = vld [vmem:[%s698 + $0x8] sm:$0xff]
                  %703 = vst [vmem:[%s699 + $0x8] sm:$0xff] %v702
                  %v704 = vld [vmem:[%s698 + $0x10] sm:$0xff]
                  %705 = vst [vmem:[%s699 + $0x10] sm:$0xff] %v704
                  %v706 = vld [vmem:[%s698 + $0x18] sm:$0xff]
                  %707 = vst [vmem:[%s699 + $0x18] sm:$0xff] %v706
                  %v708 = vld [vmem:[%s698 + $0x20] sm:$0xff]
                  %709 = vst [vmem:[%s699 + $0x20] sm:$0xff] %v708
                  %v710 = vld [vmem:[%s698 + $0x28] sm:$0xff]
                  %711 = vst [vmem:[%s699 + $0x28] sm:$0xff] %v710
                  %v712 = vld [vmem:[%s698 + $0x30] sm:$0xff]
                  %713 = vst [vmem:[%s699 + $0x30] sm:$0xff] %v712
                  %v714 = vld [vmem:[%s698 + $0x38] sm:$0xff]
                  %715 = vst [vmem:[%s699 + $0x38] sm:$0xff] %v714
                  %s716 = sadd.s32 1, %s697
                  %p717 = scmp.ge.s32.totalorder %s716, %s690
                  %s718 = scalar_select %p717, 0, %s716
                  %s719 = smul.u32 %s718, 64
                  %s720 = smul.u32 %s718, 64
                  %s721 = scalar_lea.vmem %s609, %s719 [#allocation3]
                  %s722 = scalar_lea.vmem %s620, %s720
                $region87: #{_svmnet_pallas.1} parent=81 // loop_footer
                  %s694 = sadd.s32 %s692, 1
                $region88: #{_svmnet_pallas.1} parent=81 // loop_footer_branch
                  %691 = sbr.rel target = $region84
                $region89: #{_svmnet_pallas.1} parent=81 // loop_exit
                  _
                %s723 = sshrl.u32 %s616, 3
                %s724 = sand.u32 %s616, 7
                %s725 = smul.u32 %s723, 8
                %s726 = smul.u32 8, %s725
                %s727 = scalar_lea.vmem %s609, %s726 [#allocation3]
                %s728 = smul.u32 8, %s725
                %s729 = scalar_lea.vmem %s620, %s728
                // While loop
                $region90: #{_svmnet_pallas.1} parent=81 // loop_pre_header
                  _
                $region91: #{_svmnet_pallas.1} parent=81 // loop_header
                  %s731 = sphi 0, %s733
                  %p732 = scmp.ge.s32.totalorder %s731, %s724
                  %s736 = sphi 0, %s743
                  %s737 = sphi %s727, %s746
                  %s738 = sphi %s729, %s747
                $region92: #{_svmnet_pallas.1} parent=81 // loop_header_branch
                  %735 = sbr.rel (%p732) target = $region96
                $region93: #{_svmnet_pallas.1} parent=81 // loop_body
                  %v739 = vld [vmem:[%s737] sm:$0xff]
                  %740 = vst [vmem:[%s738] sm:$0xff] %v739
                  %s741 = sadd.s32 1, %s736
                  %p742 = scmp.ge.s32.totalorder %s741, %s724
                  %s743 = scalar_select %p742, 0, %s741
                  %s744 = smul.u32 %s743, 8
                  %s745 = smul.u32 %s743, 8
                  %s746 = scalar_lea.vmem %s727, %s744 [#allocation3]
                  %s747 = scalar_lea.vmem %s729, %s745
                $region94: #{_svmnet_pallas.1} parent=81 // loop_footer
                  %s733 = sadd.s32 %s731, 1
                $region95: #{_svmnet_pallas.1} parent=81 // loop_footer_branch
                  %730 = sbr.rel target = $region91
                $region96: #{_svmnet_pallas.1} parent=81 // loop_exit
                  _
              $region82: #{_svmnet_pallas.1} parent=59 // pred_fallthru
                _
              // Predicated region
              $region97: #{_svmnet_pallas.1} parent=59 // pred_check
                _
              $region98: #{_svmnet_pallas.1} parent=59 // pred_check_branch
                %749 = sbr.rel target = $region100
              $region99: #{_svmnet_pallas.1} parent=59 // pred_region
                _
              $region100: #{_svmnet_pallas.1} parent=59 // pred_fallthru
                _
            $region60: #{_svmnet_pallas.1} parent=55 // pred_fallthru
              _
            // Predicated region
            $region61: #{_svmnet_pallas.1} parent=55 // pred_check
              _
            $region62: #{_svmnet_pallas.1} parent=55 // pred_check_branch
              %627 = sbr.rel target = $region64
            $region63: #{_svmnet_pallas.1} parent=55 // pred_region
              %s629 = ssub.s32 256, 1
              %s630 = sshrl.u32 %s616, 3
              // While loop
              $region65: #{_svmnet_pallas.1} parent=63 // loop_pre_header
                _
              $region66: #{_svmnet_pallas.1} parent=63 // loop_header
                %s632 = sphi 0, %s634
                %p633 = scmp.ge.s32.totalorder %s632, %s630
                %s637 = sphi 0, %s658
                %s638 = sphi %s609, %s661
                %s639 = sphi %s620, %s662
              $region67: #{_svmnet_pallas.1} parent=63 // loop_header_branch
                %636 = sbr.rel (%p633) target = $region71
              $region68: #{_svmnet_pallas.1} parent=63 // loop_body
                %v640 = vld [vmem:[%s638] sm:%s629]
                %641 = vst [vmem:[%s639] sm:%s629] %v640
                %v642 = vld [vmem:[%s638 + $0x8] sm:%s629]
                %643 = vst [vmem:[%s639 + $0x8] sm:%s629] %v642
                %v644 = vld [vmem:[%s638 + $0x10] sm:%s629]
                %645 = vst [vmem:[%s639 + $0x10] sm:%s629] %v644
                %v646 = vld [vmem:[%s638 + $0x18] sm:%s629]
                %647 = vst [vmem:[%s639 + $0x18] sm:%s629] %v646
                %v648 = vld [vmem:[%s638 + $0x20] sm:%s629]
                %649 = vst [vmem:[%s639 + $0x20] sm:%s629] %v648
                %v650 = vld [vmem:[%s638 + $0x28] sm:%s629]
                %651 = vst [vmem:[%s639 + $0x28] sm:%s629] %v650
                %v652 = vld [vmem:[%s638 + $0x30] sm:%s629]
                %653 = vst [vmem:[%s639 + $0x30] sm:%s629] %v652
                %v654 = vld [vmem:[%s638 + $0x38] sm:%s629]
                %655 = vst [vmem:[%s639 + $0x38] sm:%s629] %v654
                %s656 = sadd.s32 1, %s637
                %p657 = scmp.ge.s32.totalorder %s656, %s630
                %s658 = scalar_select %p657, 0, %s656
                %s659 = smul.u32 %s658, 64
                %s660 = smul.u32 %s658, 64
                %s661 = scalar_lea.vmem %s609, %s659 [#allocation3]
                %s662 = scalar_lea.vmem %s620, %s660
              $region69: #{_svmnet_pallas.1} parent=63 // loop_footer
                %s634 = sadd.s32 %s632, 1
              $region70: #{_svmnet_pallas.1} parent=63 // loop_footer_branch
                %631 = sbr.rel target = $region66
              $region71: #{_svmnet_pallas.1} parent=63 // loop_exit
                _
              %s663 = sshrl.u32 %s616, 3
              %s664 = sand.u32 %s616, 7
              %s665 = smul.u32 %s663, 8
              %s666 = smul.u32 8, %s665
              %s667 = scalar_lea.vmem %s609, %s666 [#allocation3]
              %s668 = smul.u32 8, %s665
              %s669 = scalar_lea.vmem %s620, %s668
              // While loop
              $region72: #{_svmnet_pallas.1} parent=63 // loop_pre_header
                _
              $region73: #{_svmnet_pallas.1} parent=63 // loop_header
                %s671 = sphi 0, %s673
                %p672 = scmp.ge.s32.totalorder %s671, %s664
                %s676 = sphi 0, %s683
                %s677 = sphi %s667, %s686
                %s678 = sphi %s669, %s687
              $region74: #{_svmnet_pallas.1} parent=63 // loop_header_branch
                %675 = sbr.rel (%p672) target = $region78
              $region75: #{_svmnet_pallas.1} parent=63 // loop_body
                %v679 = vld [vmem:[%s677] sm:%s629]
                %680 = vst [vmem:[%s678] sm:%s629] %v679
                %s681 = sadd.s32 1, %s676
                %p682 = scmp.ge.s32.totalorder %s681, %s664
                %s683 = scalar_select %p682, 0, %s681
                %s684 = smul.u32 %s683, 8
                %s685 = smul.u32 %s683, 8
                %s686 = scalar_lea.vmem %s667, %s684 [#allocation3]
                %s687 = scalar_lea.vmem %s669, %s685
              $region76: #{_svmnet_pallas.1} parent=63 // loop_footer
                %s673 = sadd.s32 %s671, 1
              $region77: #{_svmnet_pallas.1} parent=63 // loop_footer_branch
                %670 = sbr.rel target = $region73
              $region78: #{_svmnet_pallas.1} parent=63 // loop_exit
                _
            $region64: #{_svmnet_pallas.1} parent=55 // pred_fallthru
              _
          $region56: #{_svmnet_pallas.1} parent=51 // pred_fallthru
            _
          %750 = vnop
        $region52: #{_svmnet_pallas.1} parent=39 // pred_fallthru
          _
      $region40: #{_svmnet_pallas.1} parent=5 // pred_fallthru
        _
      %p751 = scmp.le.s32.totalorder 2, %s11
      // Predicated region
      $region101: #{_svmnet_pallas.1} parent=5 // pred_check
        %p752 = pneg %p751
      $region102: #{_svmnet_pallas.1} parent=5 // pred_check_branch
        %754 = sbr.rel (%p752) target = $region104
      $region103: #{_svmnet_pallas.1} parent=5 // pred_region
        %s755 = ssub.s32 %s11, 2
        // Predicated region
        $region105: #{_svmnet_pallas.1} parent=103 // pred_check
          %p756 = pneg %p162
        $region106: #{_svmnet_pallas.1} parent=103 // pred_check_branch
          %758 = sbr.rel (%p756) target = $region108
        $region107: #{_svmnet_pallas.1} parent=103 // pred_region
          %s759 = sand.u32 %s147, 1
          %s760 = sand.u32 %s147, 1
          %s761 = smul.addr %s760, 64
          %s762 = scalar_lea.vmem [#allocation3], %s761
        $region108: #{_svmnet_pallas.1} parent=103 // pred_fallthru
          _
      $region104: #{_svmnet_pallas.1} parent=5 // pred_fallthru
        _
    $region6: #{_svmnet_pallas.1} parent=1 // loop_footer
      %s15 = sadd.s32 1, %s11
    $region7: #{_svmnet_pallas.1} parent=1 // loop_footer_branch
      %10 = sbr.rel target = $region3
    $region8: #{_svmnet_pallas.1} parent=1 // loop_exit
      _

</llo_original>
